<compile_context>
chip_gen: v7x
topology: tpu7x:2x2x1
jax: 0.10.0
libtpu: 0.0.40
codegen_flags: <defaults>
</compile_context>

<pallas_src>
import functools

import jax
import jax.numpy as jnp
from jax.experimental import pallas as pl
from jax.experimental.pallas import tpu as pltpu


def _image_proj_ln_kernel(x_ref, w_ref, b_ref, g_ref, beta_ref, o_ref, *, eps):
    """One (token, batch-tile) block per grid step.

    x_ref    : (Bblk, E)  image embeddings (bf16 or f32)
    w_ref    : (E, D)     token-t column slab of the projection weight (pre-transposed)
    b_ref    : (1, D)     bias slab for token t
    g_ref    : (1, D)     LayerNorm gamma
    beta_ref : (1, D)     LayerNorm beta
    o_ref    : (Bblk, D)  output slab (lane-dense; D % 128 == 0)
    """
    # Single MXU matmul for this (batch tile, token) block; accumulate in f32.
    proj = jnp.dot(x_ref[...], w_ref[...], preferred_element_type=jnp.float32)
    proj = proj + b_ref[...].astype(jnp.float32)                    # (Bblk, D)

    # Per-token LayerNorm == plain last-axis reduce over D, all in f32.
    mu = jnp.mean(proj, axis=-1, keepdims=True)                     # (Bblk, 1)
    centered = proj - mu
    var = jnp.mean(centered * centered, axis=-1, keepdims=True)     # (Bblk, 1)
    inv_std = jax.lax.rsqrt(var + eps)

    out = centered * inv_std * g_ref[...].astype(jnp.float32) \
        + beta_ref[...].astype(jnp.float32)
    o_ref[...] = out.astype(o_ref.dtype)


def image_proj_model(image_embeds, params, *, clip_extra_context_tokens,
                     cross_attention_dim, use_bf16_matmul=True,
                     out_dtype=None, batch_block=None):
    """image_embeds: (B, clip_embeddings_dim). Returns (B, T, cross_attention_dim)."""
    b, e = image_embeds.shape
    t = clip_extra_context_tokens
    d = cross_attention_dim
    td = t * d

    # Token-axis tiling requires a lane-dense D block.  True for the module's
    # defaults (D = 1024) and the test shapes below.
    assert d % 128 == 0, "cross_attention_dim must be a multiple of 128 for token tiling"

    # nn.Linear weight is (out_features, in_features) -> pre-transpose once.
    w_t = params["proj_w"].T                               # (E, T*D)
    bias = params["proj_b"].reshape(1, td)                 # (1, T*D)
    gamma = params["norm_w"].reshape(1, d)                 # (1, D)
    beta = params["norm_b"].reshape(1, d)                  # (1, D)

    x = image_embeds
    if use_bf16_matmul:
        # bf16 operands, f32 accumulation.  Halves the dominant weight DMA and
        # uses the bf16-native MXU path on all generations; LN stays f32.
        x = x.astype(jnp.bfloat16)
        w_t = w_t.astype(jnp.bfloat16)

    if out_dtype is None:
        out_dtype = jnp.bfloat16 if use_bf16_matmul else jnp.float32

    # Batch tiling: cap the tile so the ~5 live (Bblk, D) f32 temporaries plus
    # double-buffered x/out stay comfortably inside VMEM on v7x (64 MiB).
    if batch_block is None:
        batch_block = min(b, 256)
    if b % batch_block != 0:        # avoid LN over padded tail rows
        batch_block = b
    bblk = batch_block
    nb = b // bblk

    # Token OUTER, batch INNER: the weight slab's block index is constant
    # across consecutive inner steps, so each (E, D) slab is fetched once and
    # reused for every batch tile.
    grid = (t, nb)

    itemsize = lambda a: jnp.dtype(a.dtype).itemsize
    cost = pl.CostEstimate(
        flops=2 * b * e * td,
        transcendentals=0,
        bytes_accessed=(w_t.size * itemsize(w_t)
                        + x.size * itemsize(x)
                        + bias.size * itemsize(bias)
                        + gamma.size * itemsize(gamma)
                        + beta.size * itemsize(beta)
                        + b * td * jnp.dtype(out_dtype).itemsize),
    )

    out_flat = pl.pallas_call(
        functools.partial(_image_proj_ln_kernel, eps=1e-5),
        out_shape=jax.ShapeDtypeStruct((b, td), out_dtype),
        grid=grid,
        in_specs=[
            pl.BlockSpec((bblk, e), lambda ti, bi: (bi, 0)),   # x: batch tile
            pl.BlockSpec((e, d), lambda ti, bi: (0, ti)),      # W^T column slab t
            pl.BlockSpec((1, d), lambda ti, bi: (0, ti)),      # bias slab t
            pl.BlockSpec((1, d), lambda ti, bi: (0, 0)),       # LN gamma (invariant)
            pl.BlockSpec((1, d), lambda ti, bi: (0, 0)),       # LN beta  (invariant)
        ],
        out_specs=pl.BlockSpec((bblk, d), lambda ti, bi: (bi, ti)),
        compiler_params=pltpu.CompilerParams(
            # All (token, batch-tile) blocks are independent -> both axes
            # parallel; v7x megacore shards the token chunks 2/2 across TCs.
            dimension_semantics=("parallel", "parallel")),
        cost_estimate=cost,
    )(x, w_t, bias, gamma, beta)

    # Free row-major reshape outside the kernel: (B, T*D) -> (B, T, D).
    return out_flat.reshape(b, t, d)


def image_proj_model_ref(image_embeds, params, *, clip_extra_context_tokens,
                         cross_attention_dim):
    """Plain-JAX reference mirroring the PyTorch forward, for verification."""
    eps = 1e-5
    proj = image_embeds @ params["proj_w"].T + params["proj_b"]
    tok = proj.reshape(-1, clip_extra_context_tokens, cross_attention_dim)
    mu = jnp.mean(tok, axis=-1, keepdims=True)
    var = jnp.mean((tok - mu) ** 2, axis=-1, keepdims=True)
    return (tok - mu) / jnp.sqrt(var + eps) * params["norm_w"] + params["norm_b"]


if __name__ == "__main__":
    # Small, module-consistent shapes (D must be a multiple of 128).
    B = 2
    CLIP_EMBED_DIM = 64        # clip_embeddings_dim
    CROSS_ATTN_DIM = 128       # cross_attention_dim
    N_TOKENS = 4               # clip_extra_context_tokens

    key = jax.random.PRNGKey(0)
    k_x, k_w, k_b, k_g, k_beta = jax.random.split(key, 5)

    image_embeds = jax.random.normal(k_x, (B, CLIP_EMBED_DIM), dtype=jnp.float32)
    params = {
        # nn.Linear weight is (out_features, in_features)
        "proj_w": jax.random.normal(
            k_w, (N_TOKENS * CROSS_ATTN_DIM, CLIP_EMBED_DIM), jnp.float32) * 0.05,
        "proj_b": 0.1 * jax.random.normal(
            k_b, (N_TOKENS * CROSS_ATTN_DIM,), jnp.float32),
        # LayerNorm affine params (deterministic, non-trivial)
        "norm_w": 1.0 + 0.1 * jax.random.normal(k_g, (CROSS_ATTN_DIM,), jnp.float32),
        "norm_b": 0.1 * jax.random.normal(k_beta, (CROSS_ATTN_DIM,), jnp.float32),
    }

    ref = image_proj_model_ref(
        image_embeds, params,
        clip_extra_context_tokens=N_TOKENS,
        cross_attention_dim=CROSS_ATTN_DIM)

    # 1) Strict check: f32 operands / f32 output.
    out_f32 = image_proj_model(
        image_embeds, params,
        clip_extra_context_tokens=N_TOKENS,
        cross_attention_dim=CROSS_ATTN_DIM,
        use_bf16_matmul=False, out_dtype=jnp.float32)
    out_f32 = jax.block_until_ready(out_f32)
    assert out_f32.shape == (B, N_TOKENS, CROSS_ATTN_DIM)
    assert out_f32.dtype == jnp.float32
    assert jnp.allclose(out_f32, ref, atol=1e-4, rtol=1e-4), "f32 path mismatch vs JAX reference"

    # 2) Default (performance) path: bf16 matmul operands + bf16 output.
    out_bf16 = image_proj_model(
        image_embeds, params,
        clip_extra_context_tokens=N_TOKENS,
        cross_attention_dim=CROSS_ATTN_DIM)
    out_bf16 = jax.block_until_ready(out_bf16)
    assert out_bf16.shape == (B, N_TOKENS, CROSS_ATTN_DIM)
    assert jnp.allclose(out_bf16.astype(jnp.float32), ref, atol=5e-2, rtol=5e-2), \
        "bf16 path mismatch vs JAX reference"

    print("KERNEL_OK")
</pallas_src>

<mosaic_0001>
module attributes {stable_mosaic.version = 11 : i64} {
  func.func @_image_proj_ln_kernel(%arg0: i32, %arg1: i32, %arg2: memref<2x64xf32, #tpu.memory_space<vmem>>, %arg3: memref<64x128xf32, #tpu.memory_space<vmem>>, %arg4: memref<1x128xf32, #tpu.memory_space<vmem>>, %arg5: memref<1x128xf32, #tpu.memory_space<vmem>>, %arg6: memref<1x128xf32, #tpu.memory_space<vmem>>, %arg7: memref<2x128xf32, #tpu.memory_space<vmem>>) attributes {dimension_semantics = [#tpu.dimension_semantics<parallel>, #tpu.dimension_semantics<parallel>], iteration_bounds = array<i64: 4, 1>, scalar_prefetch = 0 : i64, scratch_operands = 0 : i64, tpu.core_type = #tpu.core_type<tc>, window_params = [{transform_indices = @transform_0, window_bounds = array<i64: 2, 64>}, {transform_indices = @transform_1, window_bounds = array<i64: 64, 128>}, {transform_indices = @transform_2, window_bounds = array<i64: 1, 128>}, {pipeline_mode = #tpu.pipeline_mode<synchronous>, transform_indices = @transform_3, window_bounds = array<i64: 1, 128>}, {pipeline_mode = #tpu.pipeline_mode<synchronous>, transform_indices = @transform_4, window_bounds = array<i64: 1, 128>}, {transform_indices = @transform_5, window_bounds = array<i64: 2, 128>}]} {
    %c0 = arith.constant 0 : index
    %c0_0 = arith.constant 0 : index
    %0 = vector.load %arg2[%c0, %c0_0] : memref<2x64xf32, #tpu.memory_space<vmem>>, vector<2x64xf32>
    %c0_1 = arith.constant 0 : index
    %c0_2 = arith.constant 0 : index
    %1 = vector.load %arg3[%c0_1, %c0_2] : memref<64x128xf32, #tpu.memory_space<vmem>>, vector<64x128xf32>
    %cst = arith.constant dense<0.000000e+00> : vector<2x128xf32>
    %2 = tpu.matmul %0, %1, %cst {dimension_numbers = #tpu.dot_dimension_numbers<[1], [0], [0], [1], [0, 0, 1, 1], [], []>} : vector<2x64xf32>, vector<64x128xf32>, vector<2x128xf32> -> vector<2x128xf32>
    %c0_3 = arith.constant 0 : index
    %c0_4 = arith.constant 0 : index
    %3 = vector.load %arg4[%c0_3, %c0_4] : memref<1x128xf32, #tpu.memory_space<vmem>>, vector<1x128xf32>
    %4 = vector.broadcast %3 : vector<1x128xf32> to vector<2x128xf32>
    %5 = arith.addf %2, %4 : vector<2x128xf32>
    %cst_5 = arith.constant dense<0.000000e+00> : vector<2xf32>
    %6 = vector.multi_reduction <add>, %5, %cst_5 [1] : vector<2x128xf32> to vector<2xf32>
    %7 = vector.shape_cast %6 : vector<2xf32> to vector<2x1xf32>
    %cst_6 = arith.constant 1.280000e+02 : f32
    %8 = vector.broadcast %cst_6 : f32 to vector<2x1xf32>
    %9 = arith.divf %7, %8 : vector<2x1xf32>
    %10 = vector.broadcast %9 : vector<2x1xf32> to vector<2x128xf32>
    %11 = arith.subf %5, %10 : vector<2x128xf32>
    %12 = arith.mulf %11, %11 : vector<2x128xf32>
    %cst_7 = arith.constant dense<0.000000e+00> : vector<2xf32>
    %13 = vector.multi_reduction <add>, %12, %cst_7 [1] : vector<2x128xf32> to vector<2xf32>
    %14 = vector.shape_cast %13 : vector<2xf32> to vector<2x1xf32>
    %cst_8 = arith.constant 1.280000e+02 : f32
    %15 = vector.broadcast %cst_8 : f32 to vector<2x1xf32>
    %16 = arith.divf %14, %15 : vector<2x1xf32>
    %cst_9 = arith.constant 9.99999974E-6 : f32
    %17 = vector.broadcast %cst_9 : f32 to vector<2x1xf32>
    %18 = arith.addf %16, %17 : vector<2x1xf32>
    %19 = math.rsqrt %18 : vector<2x1xf32>
    %20 = vector.broadcast %19 : vector<2x1xf32> to vector<2x128xf32>
    %21 = arith.mulf %11, %20 : vector<2x128xf32>
    %c0_10 = arith.constant 0 : index
    %c0_11 = arith.constant 0 : index
    %22 = vector.load %arg5[%c0_10, %c0_11] : memref<1x128xf32, #tpu.memory_space<vmem>>, vector<1x128xf32>
    %23 = vector.broadcast %22 : vector<1x128xf32> to vector<2x128xf32>
    %24 = arith.mulf %21, %23 : vector<2x128xf32>
    %c0_12 = arith.constant 0 : index
    %c0_13 = arith.constant 0 : index
    %25 = vector.load %arg6[%c0_12, %c0_13] : memref<1x128xf32, #tpu.memory_space<vmem>>, vector<1x128xf32>
    %26 = vector.broadcast %25 : vector<1x128xf32> to vector<2x128xf32>
    %27 = arith.addf %24, %26 : vector<2x128xf32>
    %c0_14 = arith.constant 0 : index
    %c0_15 = arith.constant 0 : index
    %28 = vector.load %arg7[%c0_14, %c0_15] : memref<2x128xf32, #tpu.memory_space<vmem>>, vector<2x128xf32>
    tpu.vector_store %arg7[%c0_14, %c0_15], %27 {strides = array<i32>} : memref<2x128xf32, #tpu.memory_space<vmem>>, vector<2x128xf32>,
    return
  }
  func.func @transform_0(%arg0: i32, %arg1: i32) -> (i32, i32) {
    %c0_i32 = arith.constant 0 : i32
    %c0_i32_0 = arith.constant 0 : i32
    return %arg1, %c0_i32 : i32, i32
  }
  func.func @transform_1(%arg0: i32, %arg1: i32) -> (i32, i32) {
    %c0_i32 = arith.constant 0 : i32
    %c0_i32_0 = arith.constant 0 : i32
    return %c0_i32, %arg0 : i32, i32
  }
  func.func @transform_2(%arg0: i32, %arg1: i32) -> (i32, i32) {
    %c0_i32 = arith.constant 0 : i32
    %c0_i32_0 = arith.constant 0 : i32
    return %c0_i32, %arg0 : i32, i32
  }
  func.func @transform_3(%arg0: i32, %arg1: i32) -> (i32, i32) {
    %c0_i32 = arith.constant 0 : i32
    %c0_i32_0 = arith.constant 0 : i32
    %c0_i32_1 = arith.constant 0 : i32
    return %c0_i32, %c0_i32_0 : i32, i32
  }
  func.func @transform_4(%arg0: i32, %arg1: i32) -> (i32, i32) {
    %c0_i32 = arith.constant 0 : i32
    %c0_i32_0 = arith.constant 0 : i32
    %c0_i32_1 = arith.constant 0 : i32
    return %c0_i32, %c0_i32_0 : i32, i32
  }
  func.func @transform_5(%arg0: i32, %arg1: i32) -> (i32, i32) {
    %c0_i32 = arith.constant 0 : i32
    return %arg1, %arg0 : i32, i32
  }
}

</mosaic_0001>

<llo_original>
// kernel: tpu_custom_call.1
$region0: #{tpu_custom_call.1}
  #allocation0 [shape = 'u32[]', space=smem, size = 0x4, offset = 0x4, fixed_abs, tag = 'smem constant byte address 0x4 - core index']
  #allocation1 [shape = 'u32[144,128]{1,0:T(1,128)}', space=vmem, size = 0x12000, scoped, tag = 'internal scratch']
  %s0 = inlined_call_operand.hbm [shape: f32[2,64], index: 0, kind: input, shape index: {}]
  %s1 = inlined_call_operand.hbm [shape: f32[64,512], index: 1, kind: input, shape index: {}]
  %s2 = inlined_call_operand.vmem [shape: f32[1,512], index: 2, kind: input, shape index: {}]
  %s3 = inlined_call_operand.vmem [shape: f32[1,128], index: 3, kind: input, shape index: {}]
  %s4 = inlined_call_operand.vmem [shape: f32[1,128], index: 4, kind: input, shape index: {}]
  %s5 = inlined_call_operand.hbm [shape: f32[2,512], index: 5, kind: output, shape index: {}]
  %s6 = sld [smem:[#allocation0]]
  $region61: #{tpu_custom_call.1} parent=0
    _
  %s8 = ssub.s32 1, %s6
  %s9 = scalar_select 0, %s8, %s6
  $region1: #{tpu_custom_call.1} parent=0
    #allocation2 [shape = 'u8[1024]{0}', space=vmem, size = 0x400, scoped, tag = 'input window, operand 0, single buffered']
    #allocation3 [shape = 's32[2]{0}', space=sflag, size = 0x8, scoped, tag = 'scoped memory for tpu_custom_call.1']
    #allocation4 [shape = 's32[2]{0}', space=sflag, size = 0x8, scoped, tag = 'scoped memory for tpu_custom_call.1']
    #allocation5 [shape = 'u8[65536]{0}', space=vmem, size = 0x10000, scoped, tag = 'input window, operand 1']
    #allocation6 [shape = 's32[2]{0}', space=sflag, size = 0x8, scoped, tag = 'scoped memory for tpu_custom_call.1']
    #allocation7 [shape = 'u8[2048]{0}', space=vmem, size = 0x800, scoped, tag = 'output window, operand 0']
    %10 = vsyncpa [#allocation3], 0
    %11 = vsyncpa [#allocation6], 0
    %s12 = scalar_lea.sflag [#allocation6], 1
    %13 = vsyncpa %s12, 0
    %14 = vsyncpa [#allocation4], 0
    %s15 = scalar_lea.sflag [#allocation4], 1
    %16 = vsyncpa %s15, 0
    loop: start=0, step=1, limit=6
    $region2: #{tpu_custom_call.1} parent=1 // loop_pre_header
      _
    $region3: #{tpu_custom_call.1} parent=1 // loop_header
      %s18 = sphi 0, %s22
      %p19 = scmp.ge.s32.totalorder %s18, 6
      %s25 = sphi 0, %s37
      %s26 = sphi 0, %s33
      %s27 = sphi 0, %s25
      %s28 = sphi 0, %s26
      %s29 = sphi 0, %s27
      %s30 = sphi 0, %s28
      %s40 = sphi 0, %s42
      %s43 = sphi 0, %s40
      %s44 = sphi 0, %s43
      %s60 = sphi 0, %s44
      %s66 = sphi 0, %s68
      %s69 = sphi 0, %s66
      %s70 = sphi 0, %s69
      %s86 = sphi 0, %s70
      %s92 = sphi 0, %s94
      %s95 = sphi 0, %s92
      %s96 = sphi 0, %s95
      %s112 = sphi 0, %s96
      %s116 = sphi 0, %s116
      %s118 = sphi 0, %s116
      %s119 = sphi 0, %s118
      %s133 = sphi 0, %s119
      %s137 = sphi 0, %s137
      %s139 = sphi 0, %s137
      %s140 = sphi 0, %s139
      %s154 = sphi 0, %s140
      %s162 = sphi 0, %s164
      %s165 = sphi 0, %s162
      %s166 = sphi 0, %s165
      %s182 = sphi 0, %s166
    $region4: #{tpu_custom_call.1} parent=1 // loop_header_branch
      %21 = sbr.rel (%p19) target = $region8
    $region5: #{tpu_custom_call.1} parent=1 // loop_body
      %s23 = ssub.s32 %s18, 1
      %s24 = ssub.s32 %s18, 2
      %s31 = sadd.s32 1, %s26
      %p32 = scmp.ge.s32.totalorder %s31, 1
      %s33 = scalar_select %p32, 0, %s31
      %s34 = sadd.s32 1, %s25
      %s35 = scalar_select %p32, %s34, %s25
      %p36 = scmp.ge.s32.totalorder %s35, 4
      %s37 = scalar_select %p36, 0, %s35
      %s38 = ssub.s32 %s26, %s33
      %p39 = scmp.eq.s32.totalorder %s38, 0
      %s41 = sadd.s32 %s40, 1
      %s42 = scalar_select %p39, %s40, %s41
      %p45 = pneg %p39
      %p46 = scmp.eq.s32.totalorder %s18, 3
      %p47 = por %p45, %p46
      %p48 = scmp.ne.s32.totalorder %s40, %s43
      %p49 = scmp.eq.s32.totalorder %s18, 0
      %p50 = por %p48, %p49
      %p51 = scmp.ne.s32.totalorder %s40, %s43
      %p52 = scmp.eq.s32.totalorder %s23, 3
      %p53 = por %p51, %p52
      %p54 = scmp.ne.s32.totalorder %s43, %s44
      %p55 = scmp.eq.s32.totalorder %s23, 0
      %p56 = por %p54, %p55
      %p57 = scmp.ne.s32.totalorder %s43, %s44
      %p58 = scmp.eq.s32.totalorder %s24, 3
      %p59 = por %p57, %p58
      %p61 = scmp.ne.s32.totalorder %s44, %s60
      %p62 = scmp.eq.s32.totalorder %s24, 0
      %p63 = por %p61, %p62
      %s64 = ssub.s32 %s25, %s37
      %p65 = scmp.eq.s32.totalorder %s64, 0
      %s67 = sadd.s32 %s66, 1
      %s68 = scalar_select %p65, %s66, %s67
      %p71 = pneg %p65
      %p72 = scmp.eq.s32.totalorder %s18, 3
      %p73 = por %p71, %p72
      %p74 = scmp.ne.s32.totalorder %s66, %s69
      %p75 = scmp.eq.s32.totalorder %s18, 0
      %p76 = por %p74, %p75
      %p77 = scmp.ne.s32.totalorder %s66, %s69
      %p78 = scmp.eq.s32.totalorder %s23, 3
      %p79 = por %p77, %p78
      %p80 = scmp.ne.s32.totalorder %s69, %s70
      %p81 = scmp.eq.s32.totalorder %s23, 0
      %p82 = por %p80, %p81
      %p83 = scmp.ne.s32.totalorder %s69, %s70
      %p84 = scmp.eq.s32.totalorder %s24, 3
      %p85 = por %p83, %p84
      %p87 = scmp.ne.s32.totalorder %s70, %s86
      %p88 = scmp.eq.s32.totalorder %s24, 0
      %p89 = por %p87, %p88
      %s90 = ssub.s32 %s25, %s37
      %p91 = scmp.eq.s32.totalorder %s90, 0
      %s93 = sadd.s32 %s92, 1
      %s94 = scalar_select %p91, %s92, %s93
      %p97 = pneg %p91
      %p98 = scmp.eq.s32.totalorder %s18, 3
      %p99 = por %p97, %p98
      %p100 = scmp.ne.s32.totalorder %s92, %s95
      %p101 = scmp.eq.s32.totalorder %s18, 0
      %p102 = por %p100, %p101
      %p103 = scmp.ne.s32.totalorder %s92, %s95
      %p104 = scmp.eq.s32.totalorder %s23, 3
      %p105 = por %p103, %p104
      %p106 = scmp.ne.s32.totalorder %s95, %s96
      %p107 = scmp.eq.s32.totalorder %s23, 0
      %p108 = por %p106, %p107
      %p109 = scmp.ne.s32.totalorder %s95, %s96
      %p110 = scmp.eq.s32.totalorder %s24, 3
      %p111 = por %p109, %p110
      %p113 = scmp.ne.s32.totalorder %s96, %s112
      %p114 = scmp.eq.s32.totalorder %s24, 0
      %p115 = por %p113, %p114
      %s117 = sadd.s32 %s116, 1
      %p120 = scmp.eq.s32.totalorder %s18, 3
      %p121 = scmp.ne.s32.totalorder %s116, %s118
      %p122 = scmp.eq.s32.totalorder %s18, 0
      %p123 = por %p121, %p122
      %p124 = scmp.ne.s32.totalorder %s116, %s118
      %p125 = scmp.eq.s32.totalorder %s23, 3
      %p126 = por %p124, %p125
      %p127 = scmp.ne.s32.totalorder %s118, %s119
      %p128 = scmp.eq.s32.totalorder %s23, 0
      %p129 = por %p127, %p128
      %p130 = scmp.ne.s32.totalorder %s118, %s119
      %p131 = scmp.eq.s32.totalorder %s24, 3
      %p132 = por %p130, %p131
      %p134 = scmp.ne.s32.totalorder %s119, %s133
      %p135 = scmp.eq.s32.totalorder %s24, 0
      %p136 = por %p134, %p135
      %s138 = sadd.s32 %s137, 1
      %p141 = scmp.eq.s32.totalorder %s18, 3
      %p142 = scmp.ne.s32.totalorder %s137, %s139
      %p143 = scmp.eq.s32.totalorder %s18, 0
      %p144 = por %p142, %p143
      %p145 = scmp.ne.s32.totalorder %s137, %s139
      %p146 = scmp.eq.s32.totalorder %s23, 3
      %p147 = por %p145, %p146
      %p148 = scmp.ne.s32.totalorder %s139, %s140
      %p149 = scmp.eq.s32.totalorder %s23, 0
      %p150 = por %p148, %p149
      %p151 = scmp.ne.s32.totalorder %s139, %s140
      %p152 = scmp.eq.s32.totalorder %s24, 3
      %p153 = por %p151, %p152
      %p155 = scmp.ne.s32.totalorder %s140, %s154
      %p156 = scmp.eq.s32.totalorder %s24, 0
      %p157 = por %p155, %p156
      %s158 = ssub.s32 %s26, %s33
      %s159 = ssub.s32 %s25, %s37
      %s160 = sor.u32 %s158, %s159
      %p161 = scmp.eq.s32.totalorder %s160, 0
      %s163 = sadd.s32 %s162, 1
      %s164 = scalar_select %p161, %s162, %s163
      %p167 = pneg %p161
      %p168 = scmp.eq.s32.totalorder %s18, 3
      %p169 = por %p167, %p168
      %p170 = scmp.ne.s32.totalorder %s162, %s165
      %p171 = scmp.eq.s32.totalorder %s18, 0
      %p172 = por %p170, %p171
      %p173 = scmp.ne.s32.totalorder %s162, %s165
      %p174 = scmp.eq.s32.totalorder %s23, 3
      %p175 = por %p173, %p174
      %p176 = scmp.ne.s32.totalorder %s165, %s166
      %p177 = scmp.eq.s32.totalorder %s23, 0
      %p178 = por %p176, %p177
      %p179 = scmp.ne.s32.totalorder %s165, %s166
      %p180 = scmp.eq.s32.totalorder %s24, 3
      %p181 = por %p179, %p180
      %p183 = scmp.ne.s32.totalorder %s166, %s182
      %p184 = scmp.eq.s32.totalorder %s24, 0
      %p185 = por %p183, %p184
      %p186 = scmp.le.s32.totalorder 1, %s18
      %p187 = scmp.lt.s32.totalorder %s18, 5
      %p188 = pnand %p186, %p187
      %p189 = pneg %p188
      // Predicated region
      $region9: #{tpu_custom_call.1} parent=5 // pred_check
        _
      $region10: #{tpu_custom_call.1} parent=5 // pred_check_branch
        %191 = sbr.rel (%p188) target = $region12
      $region11: #{tpu_custom_call.1} parent=5 // pred_region
        %s192 = ssub.s32 %s18, 1
        // Predicated region
        $region13: #{tpu_custom_call.1} parent=11 // pred_check
          %p193 = pneg %p56
        $region14: #{tpu_custom_call.1} parent=11 // pred_check_branch
          %195 = sbr.rel (%p193) target = $region16
        $region15: #{tpu_custom_call.1} parent=11 // pred_region
          %s197 = ssub.s32 32, 32
          %198 = vsyncadd [#allocation3], %s197
          %s199 = smul.addr %s28, 32
          %s200 = scalar_lea.hbm %s0, %s199
          %s202 = sshll.u32 [#allocation2], 4
          %s203 = int_to_ptr.vmem [resolvable:$true] %s202
          %205 = dma.hbm_to_vmem [thread:$0]  %s200, 32, %s203, [#allocation3]
        $region16: #{tpu_custom_call.1} parent=11 // pred_fallthru
          _
        // Predicated region
        $region17: #{tpu_custom_call.1} parent=11 // pred_check
          %p206 = pneg %p129
        $region18: #{tpu_custom_call.1} parent=11 // pred_check_branch
          %208 = sbr.rel (%p206) target = $region20
        $region19: #{tpu_custom_call.1} parent=11 // pred_region
          _
        $region20: #{tpu_custom_call.1} parent=11 // pred_fallthru
          _
        // Predicated region
        $region21: #{tpu_custom_call.1} parent=11 // pred_check
          %p209 = pneg %p150
        $region22: #{tpu_custom_call.1} parent=11 // pred_check_branch
          %211 = sbr.rel (%p209) target = $region24
        $region23: #{tpu_custom_call.1} parent=11 // pred_region
          _
        $region24: #{tpu_custom_call.1} parent=11 // pred_fallthru
          _
      $region12: #{tpu_custom_call.1} parent=5 // pred_fallthru
        _
      %p212 = scmp.lt.s32.totalorder %s18, 4
      // Predicated region
      $region25: #{tpu_custom_call.1} parent=5 // pred_check
        %p213 = pneg %p212
      $region26: #{tpu_custom_call.1} parent=5 // pred_check_branch
        %215 = sbr.rel (%p213) target = $region28
      $region27: #{tpu_custom_call.1} parent=5 // pred_region
        // Predicated region
        $region29: #{tpu_custom_call.1} parent=27 // pred_check
          %p216 = pneg %p76
        $region30: #{tpu_custom_call.1} parent=27 // pred_check_branch
          %218 = sbr.rel (%p216) target = $region32
        $region31: #{tpu_custom_call.1} parent=27 // pred_region
          %s219 = sand.u32 %s66, 1
          %s220 = scalar_lea.sflag [#allocation6], %s219
          %s221 = sand.u32 %s66, 1
          %s222 = smul.addr %s221, 64
          %s223 = scalar_lea.vmem [#allocation5], %s222
          %s225 = ssub.s32 1024, 1024
          %226 = vsyncadd %s220, %s225
          %s227 = smul.addr %s25, 128
          %s228 = scalar_lea.hbm %s1, %s227
          %s229 = sshll.u32 %s223, 4
          %s230 = int_to_ptr.vmem [resolvable:$true] %s229
          %235 = dma.hbm_to_vmem [thread:$0]  %s228, 1024, %s230, %s220, 512, 128, 8
        $region32: #{tpu_custom_call.1} parent=27 // pred_fallthru
          _
        // Predicated region
        $region33: #{tpu_custom_call.1} parent=27 // pred_check
          %p236 = pneg %p102
        $region34: #{tpu_custom_call.1} parent=27 // pred_check_branch
          %238 = sbr.rel (%p236) target = $region36
        $region35: #{tpu_custom_call.1} parent=27 // pred_region
          %p239 = scmp.lt.s32.totalorder %s25, 3
          %s240 = scalar_select %p239, %s25, 3
          %s241 = scalar_lea.vmem %s2, %s240
        $region36: #{tpu_custom_call.1} parent=27 // pred_fallthru
          _
      $region28: #{tpu_custom_call.1} parent=5 // pred_fallthru
        _
      %p242 = scmp.le.s32.totalorder 1, %s18
      %p243 = scmp.lt.s32.totalorder %s18, 5
      %p244 = pnand %p242, %p243
      %p245 = pneg %p244
      // Predicated region
      $region37: #{tpu_custom_call.1} parent=5 // pred_check
        _
      $region38: #{tpu_custom_call.1} parent=5 // pred_check_branch
        %247 = sbr.rel (%p244) target = $region40
      $region39: #{tpu_custom_call.1} parent=5 // pred_region
        %s248 = ssub.s32 %s18, 1
        // Predicated region
        $region41: #{tpu_custom_call.1} parent=39 // pred_check
          %p249 = pneg %p56
        $region42: #{tpu_custom_call.1} parent=39 // pred_check_branch
          %251 = sbr.rel (%p249) target = $region44
        $region43: #{tpu_custom_call.1} parent=39 // pred_region
          %252 = dma.done [#allocation3], 32
        $region44: #{tpu_custom_call.1} parent=39 // pred_fallthru
          _
        %s253 = sand.u32 %s69, 1
        %s254 = scalar_lea.sflag [#allocation6], %s253
        %s255 = sand.u32 %s69, 1
        %s256 = smul.addr %s255, 64
        %s257 = scalar_lea.vmem [#allocation5], %s256
        // Predicated region
        $region45: #{tpu_custom_call.1} parent=39 // pred_check
          %p258 = pneg %p82
        $region46: #{tpu_custom_call.1} parent=39 // pred_check_branch
          %260 = sbr.rel (%p258) target = $region48
        $region47: #{tpu_custom_call.1} parent=39 // pred_region
          %261 = dma.done %s254, 1024
        $region48: #{tpu_custom_call.1} parent=39 // pred_fallthru
          _
        %p262 = pneg %p56
        %p263 = pneg %p53
        %s264 = sand.u32 %s69, 1
        %s265 = scalar_lea.sflag [#allocation6], %s264
        %s266 = sand.u32 %s69, 1
        %s267 = smul.addr %s266, 64
        %s268 = scalar_lea.vmem [#allocation5], %s267
        %p269 = pneg %p82
        %p270 = pneg %p79
        %p271 = scmp.lt.s32.totalorder %s27, 3
        %s272 = scalar_select %p271, %s27, 3
        %s273 = scalar_lea.vmem %s2, %s272
        %p274 = pneg %p108
        %p275 = pneg %p105
        %p276 = pneg %p129
        %p277 = pneg %p126
        %p278 = pneg %p150
        %p279 = pneg %p147
        %p280 = pneg %p178
        %p281 = pneg %p175
        %s282 = sand.u32 %s165, 1
        %s283 = scalar_lea.sflag [#allocation4], %s282
        %s284 = sand.u32 %s165, 1
        %s285 = smul.addr %s284, 2
        %s286 = scalar_lea.vmem [#allocation7], %s285
        %p287 = scmp.lt.s32.totalorder %s27, 3
        %s288 = scalar_select %p287, %s27, 3
        %s289 = scalar_lea.vmem %s2, %s288
        %v290 = vld [vmem:[#allocation2] sm:$0x3]
        %v291 = vld [vmem:[%s257] sm:$0xff]
        %v292 = vld [vmem:[%s257 + $0x8] sm:$0xff]
        %v293 = vld [vmem:[%s257 + $0x10] sm:$0xff]
        %v294 = vld [vmem:[%s257 + $0x18] sm:$0xff]
        %v295 = vld [vmem:[%s257 + $0x20] sm:$0xff]
        %v296 = vld [vmem:[%s257 + $0x28] sm:$0xff]
        %v297 = vld [vmem:[%s257 + $0x30] sm:$0xff]
        %v298 = vld [vmem:[%s257 + $0x38] sm:$0xff]
        %v299 = vld [vmem:[%s289] sm:$0x1]
        %v301 = vlaneseq
        %v302 = vshrl.u32 %v301, 7
        %v303 = vsub.s32 0, %v302
        %v304 = vrot.slane %v299, %v303
        %vm306 = vcmask 523264
        %v308 = vsel %vm306, %v290, 0
        %310 = vmatprep.subr.mxu0 0.0
        %311 = vmatpush1.msra.mxu0 %v291
        %312 = vmatprep.subr.mxu0 0.0
        %313 = vmatpush1.msra.mxu0 %v292
        %314 = vmatprep.subr.mxu0 0.0
        %315 = vmatpush1.msra.mxu0 %v293
        %316 = vmatprep.subr.mxu0 0.0
        %317 = vmatpush1.msra.mxu0 %v294
        %318 = vmatprep.subr.mxu0 0.0
        %319 = vmatpush1.msra.mxu0 %v295
        %320 = vmatprep.subr.mxu0 0.0
        %321 = vmatpush1.msra.mxu0 %v296
        %322 = vmatprep.subr.mxu0 0.0
        %323 = vmatpush1.msra.mxu0 %v297
        %324 = vmatprep.subr.mxu0 0.0
        %325 = vmatpush1.msra.mxu0 %v298
        %326 = vmatprep.subr.mxu0 0.0
        %327 = vmatpush1.msra.mxu0 0.0
        %328 = vmatprep.subr.mxu0 0.0
        %329 = vmatpush1.msra.mxu0 0.0
        %330 = vmatprep.subr.mxu0 0.0
        %331 = vmatpush1.msra.mxu0 0.0
        %332 = vmatprep.subr.mxu0 0.0
        %333 = vmatpush1.msra.mxu0 0.0
        %334 = vmatprep.subr.mxu0 0.0
        %335 = vmatpush1.msra.mxu0 0.0
        %336 = vmatprep.subr.mxu0 0.0
        %337 = vmatpush1.msra.mxu0 0.0
        %338 = vmatprep.subr.mxu0 0.0
        %339 = vmatpush1.msra.mxu0 0.0
        %340 = vmatprep.subr.mxu0 0.0
        %341 = vmatpush1.msra.mxu0 0.0
        %342 = vmatprep.subr.mxu0 0.0
        %343 = vmatpush1.msra.mxu0 0.0
        %344 = vmatprep.subr.mxu0 0.0
        %345 = vmatpush1.msra.mxu0 0.0
        %346 = vmatprep.subr.mxu0 0.0
        %347 = vmatpush1.msra.mxu0 0.0
        %348 = vmatprep.subr.mxu0 0.0
        %349 = vmatpush1.msra.mxu0 0.0
        %350 = vmatprep.subr.mxu0 0.0
        %351 = vmatpush1.msra.mxu0 0.0
        %352 = vmatprep.subr.mxu0 0.0
        %353 = vmatpush1.msra.mxu0 0.0
        %354 = vmatprep.subr.mxu0 0.0
        %355 = vmatpush1.msra.mxu0 0.0
        %356 = vmatprep.subr.mxu0 0.0
        %357 = vmatpush1.msra.mxu0 0.0
        %358 = vmatprep.subr.mxu0 0.0
        %359 = vmatpush1.msra.mxu0 0.0
        %360 = vmatprep.subr.mxu0 0.0
        %361 = vmatpush1.msra.mxu0 0.0
        %362 = vmatprep.subr.mxu0 0.0
        %363 = vmatpush1.msra.mxu0 0.0
        %364 = vmatprep.subr.mxu0 0.0
        %365 = vmatpush1.msra.mxu0 0.0
        %366 = vmatprep.subr.mxu0 0.0
        %367 = vmatpush1.msra.mxu0 0.0
        %368 = vmatprep.subr.mxu0 0.0
        %369 = vmatpush1.msra.mxu0 0.0
        %370 = vmatprep.subr.mxu0 0.0
        %371 = vmatpush1.msra.mxu0 0.0
        %372 = vmatprep.subr.mxu0 0.0
        %373 = vmatpush1.msra.mxu0 0.0
        %374 = vmatprep.mubr.f32.mxu0 0.0
        %375 = vmatmul.mubr.f32.gmra.mrb[0].mxu0 %v308
        %v376 = vpop.f32.mrb[0].mxu0
        %v377 = vadd.f32 %v304, %v376
        %v378 = vpop.f32.mrb[0].mxu0
        %379 = vdwg.mxu0
        %vm380 = vcmask 1041408
        %v381 = vsel %vm380, %v377, 0.0
        %382 = vadd.xlane.f32.xlu0 %v381
        %v383 = vpop.xlane.xlu0 %382
        %v384 = vrcp.pop 128.0
        %v385 = vmul.f32 %v383, %v384
        %v386 = vsub.f32 %v377, %v385
        %v387 = vmul.f32 %v386, %v386
        %v388 = vsel %vm380, %v387, 0.0
        %389 = vadd.xlane.f32.xlu0 %v388
        %v390 = vpop.xlane.xlu0 %389
        %v391 = vmul.f32 %v390, %v384
        %v392 = vadd.f32 %v391, 1e-05
        %v393 = vrsqrt.pop %v392
        %v394 = vmul.f32 %v386, %v393
        %v395 = vld [vmem:[%s3] sm:$0x1]
        %v397 = vlaneseq
        %v398 = vshrl.u32 %v397, 7
        %v399 = vsub.s32 0, %v398
        %v400 = vrot.slane %v395, %v399
        %v402 = vmul.f32 %v394, %v400
        %v403 = vld [vmem:[%s4] sm:$0x1]
        %v405 = vlaneseq
        %v406 = vshrl.u32 %v405, 7
        %v407 = vsub.s32 0, %v406
        %v408 = vrot.slane %v403, %v407
        %v410 = vadd.f32 %v402, %v408
        %411 = vst [vmem:[%s286] sm:$0x3] %v410
        %s412 = sand.u32 %s165, 1
        %s413 = scalar_lea.sflag [#allocation4], %s412
        %s414 = sand.u32 %s165, 1
        %s415 = smul.addr %s414, 2
        %s416 = scalar_lea.vmem [#allocation7], %s415
        // Predicated region
        $region49: #{tpu_custom_call.1} parent=39 // pred_check
          %p417 = pneg %p175
        $region50: #{tpu_custom_call.1} parent=39 // pred_check_branch
          %419 = sbr.rel (%p417) target = $region52
        $region51: #{tpu_custom_call.1} parent=39 // pred_region
          %s421 = ssub.s32 32, 32
          %422 = vsyncadd %s413, %s421
          %s423 = smul.addr %s28, 4
          %s424 = sadd.s32 %s27, %s423
          %s425 = smul.addr %s424, 32
          %s426 = scalar_lea.hbm %s5, %s425
          %s428 = sshll.u32 %s416, 4
          %s429 = int_to_ptr.vmem [resolvable:$true] %s428
          %431 = dma.vmem_to_hbm [thread:$0]  %s429, 32, %s426, %s413
        $region52: #{tpu_custom_call.1} parent=39 // pred_fallthru
          _
      $region40: #{tpu_custom_call.1} parent=5 // pred_fallthru
        _
      %p432 = scmp.le.s32.totalorder 2, %s18
      // Predicated region
      $region53: #{tpu_custom_call.1} parent=5 // pred_check
        %p433 = pneg %p432
      $region54: #{tpu_custom_call.1} parent=5 // pred_check_branch
        %435 = sbr.rel (%p433) target = $region56
      $region55: #{tpu_custom_call.1} parent=5 // pred_region
        %s436 = ssub.s32 %s18, 2
        // Predicated region
        $region57: #{tpu_custom_call.1} parent=55 // pred_check
          %p437 = pneg %p181
        $region58: #{tpu_custom_call.1} parent=55 // pred_check_branch
          %439 = sbr.rel (%p437) target = $region60
        $region59: #{tpu_custom_call.1} parent=55 // pred_region
          %s440 = sand.u32 %s166, 1
          %s441 = scalar_lea.sflag [#allocation4], %s440
          %s442 = sand.u32 %s166, 1
          %s443 = smul.addr %s442, 2
          %s444 = scalar_lea.vmem [#allocation7], %s443
          %445 = dma.done %s441, 32
        $region60: #{tpu_custom_call.1} parent=55 // pred_fallthru
          _
      $region56: #{tpu_custom_call.1} parent=5 // pred_fallthru
        _
    $region6: #{tpu_custom_call.1} parent=1 // loop_footer
      %s22 = sadd.s32 1, %s18
    $region7: #{tpu_custom_call.1} parent=1 // loop_footer_branch
      %17 = sbr.rel target = $region3
    $region8: #{tpu_custom_call.1} parent=1 // loop_exit
      _
    %446 = vsyncpa [#allocation3], 1
    %s447 = scalar_lea.sflag [#allocation3], 1
    %448 = vsyncpa %s447, 1
    %449 = vsyncpa [#allocation6], 1
    %s450 = scalar_lea.sflag [#allocation6], 1
    %451 = vsyncpa %s450, 1
    %452 = vsyncpa [#allocation4], 1
    %s453 = scalar_lea.sflag [#allocation4], 1
    %454 = vsyncpa %s453, 1

</llo_original>
